<compile_context>
chip_gen: v5e
topology: v5e:2x2
jax: 0.10.0
libtpu: 0.0.40
codegen_flags: <defaults>
</compile_context>

<pallas_src>
import jax
import jax.numpy as jnp
from jax.experimental import pallas as pl
from jax.experimental.pallas import tpu as pltpu


def re_kernel(h1_ref, h2_ref,
              wr1_ref, wr2_ref, br_ref,
              whh12_ref, whh3_ref, bhh_ref,
              gamma_ref, beta_ref,
              whr_ref, bhr_ref,
              out_ref,
              smax_ref, h1max_ref):
    l = pl.program_id(1)                      # length-tile (reduction) axis
    tl, tb, H = h1_ref.shape

    @pl.when(l == 0)
    def _():
        smax_ref[...] = jnp.full_like(smax_ref, -jnp.inf)
        h1max_ref[...] = jnp.full_like(h1max_ref, -jnp.inf)

    h1 = h1_ref[...]                          # (tl, tb, H) f32
    h2 = h2_ref[...]                          # (tl, tb, H) f32

    # Batched pre-activation for the r-Linear: one (tl*tb, H) x (H, H) dot per
    # weight half (tb is 8-aligned -> reshape is a free sublane view).
    h1f = h1.reshape(tl * tb, H)
    h2f = h2.reshape(tl * tb, H)
    s = (jnp.dot(h1f, wr1_ref[...], preferred_element_type=jnp.float32)
         + jnp.dot(h2f, wr2_ref[...], preferred_element_type=jnp.float32))

    # Running max over the length axis (tanh/bias applied once after the reduction).
    smax_ref[...] = jnp.maximum(smax_ref[...],
                                jnp.max(s.reshape(tl, tb, H), axis=0))
    h1max_ref[...] = jnp.maximum(h1max_ref[...], jnp.max(h1, axis=0))

    @pl.when(l == pl.num_programs(1) - 1)
    def _():
        # tanh(max_L(s) + br) == max_L(tanh(s + br))  (tanh monotone, br L-invariant)
        g_max = jnp.tanh(smax_ref[...] + br_ref[...])          # (tb, H)
        h1_max = h1max_ref[...]                                # (tb, H)

        # hre1 == hre2 == max(h_re1)  ->  whh12 = Whh[:H] + Whh[H:2H] folded in wrapper.
        z = (jnp.dot(h1_max, whh12_ref[...], preferred_element_type=jnp.float32)
             + jnp.dot(g_max, whh3_ref[...], preferred_element_type=jnp.float32)
             + bhh_ref[...])                                   # (tb, H)

        # LayerNorm over last dim (eps = 1e-5, PyTorch default)
        mean = jnp.mean(z, axis=-1, keepdims=True)
        var = jnp.mean((z - mean) ** 2, axis=-1, keepdims=True)
        zn = (z - mean) * jax.lax.rsqrt(var + 1e-5)
        zn = zn * gamma_ref[...] + beta_ref[...]

        # dropout (identity, eval) then ELU(alpha=1); clamp exp arg on the dead branch.
        e = jnp.where(zn > 0, zn, jnp.exp(jnp.minimum(zn, 0.0)) - 1.0)

        out_ref[...] = (jnp.dot(e, whr_ref[...], preferred_element_type=jnp.float32)
                        + bhr_ref[...]).astype(out_ref.dtype)


def re_forward(h_re1, h_re2, params, *, tile_l=None, tile_b=None):
    L, B, H = h_re1.shape
    wr, br, whh, bhh, gamma, beta, whr, bhr = params
    R = whr.shape[-1]

    # --- wrapper-side layout plumbing (all free / one-time XLA ops) -----------
    # Split the 2H->H concat weight; fold Whh[:H] + Whh[H:2H] (both hit max(h_re1)).
    wr1, wr2 = wr[:H], wr[H:]
    whh12 = whh[:H] + whh[H:2 * H]
    whh3 = whh[2 * H:]

    # Pad relation dim to a lane-dense multiple of 128 (unmasked output stores).
    Rp = ((R + 127) // 128) * 128
    whr_p = jnp.pad(whr, ((0, 0), (0, Rp - R)))
    bhr_p = jnp.pad(bhr, ((0, 0), (0, Rp - R)))

    # Pad batch to a multiple of 8 (sublane) so in-kernel reshapes are free views.
    Bp = ((B + 7) // 8) * 8
    if Bp != B:
        h_re1 = jnp.pad(h_re1, ((0, 0), (0, Bp - B), (0, 0)))
        h_re2 = jnp.pad(h_re2, ((0, 0), (0, Bp - B), (0, 0)))

    # Length tile: ~1 MiB of activation per operand per step (min 1 row).
    if tile_l is None:
        tile_l = max(1, min(L, (1 << 20) // max(1, Bp * H * 4)))
    tile_l = max(1, min(tile_l, L))
    # Pad L to a multiple of tile_l by repeating the last position (max-invariant).
    Lp = ((L + tile_l - 1) // tile_l) * tile_l
    if Lp != L:
        h_re1 = jnp.pad(h_re1, ((0, Lp - L), (0, 0), (0, 0)), mode='edge')
        h_re2 = jnp.pad(h_re2, ((0, Lp - L), (0, 0), (0, 0)), mode='edge')

    # Batch tile: split across TensorCores when big enough (v7x megacore).
    if tile_b is None:
        half = Bp // 2 if Bp >= 16 else Bp
        tile_b = half if (half % 8 == 0 and Bp % half == 0) else Bp
    tile_b = min(tile_b, Bp)
    if Bp % tile_b != 0 or tile_b % 8 != 0:
        tile_b = Bp
    nb = Bp // tile_b
    nl = Lp // tile_l

    act_map = lambda b, l: (l, b, 0)
    const2 = lambda b, l: (0, 0)
    out_map = lambda b, l: (b, 0)

    grid_spec = pltpu.PrefetchScalarGridSpec(
        num_scalar_prefetch=0,
        grid=(nb, nl),
        in_specs=[
            pl.BlockSpec((tile_l, tile_b, H), act_map),   # h_re1 tile
            pl.BlockSpec((tile_l, tile_b, H), act_map),   # h_re2 tile
            pl.BlockSpec((H, H), const2),                 # Wr[:H]
            pl.BlockSpec((H, H), const2),                 # Wr[H:]
            pl.BlockSpec((1, H), const2),                 # br
            pl.BlockSpec((H, H), const2),                 # Whh[:H] + Whh[H:2H]
            pl.BlockSpec((H, H), const2),                 # Whh[2H:]
            pl.BlockSpec((1, H), const2),                 # bhh
            pl.BlockSpec((1, H), const2),                 # ln gamma
            pl.BlockSpec((1, H), const2),                 # ln beta
            pl.BlockSpec((H, Rp), const2),                # Whr (lane-padded)
            pl.BlockSpec((1, Rp), const2),                # bhr (lane-padded)
        ],
        out_specs=pl.BlockSpec((tile_b, Rp), out_map),
        scratch_shapes=[
            pltpu.VMEM((tile_b, H), jnp.float32),         # running max of pre-activation s
            pltpu.VMEM((tile_b, H), jnp.float32),         # running max of h_re1
        ],
    )

    # VMEM budget with headroom (double-buffered activations + weights + out + scratch).
    act_tile = tile_l * tile_b * H * 4
    weights = (4 * H * H + H * Rp + 5 * H + Rp) * 4
    est = 2 * 2 * act_tile + 2 * weights + 2 * tile_b * Rp * 4 + 2 * tile_b * H * 4
    vmem_limit = int(min(max(4 * est, 16 * 2 ** 20), 64 * 2 ** 20))

    cost = pl.CostEstimate(
        flops=(4 * Lp * Bp * H * H) + (4 * Bp * H * H) + (2 * Bp * H * Rp),
        transcendentals=2 * Bp * H,
        bytes_accessed=(2 * Lp * Bp * H + Bp * Rp) * 4 + weights,
    )

    out_full = pl.pallas_call(
        re_kernel,
        out_shape=jax.ShapeDtypeStruct((Bp, Rp), jnp.float32),
        grid_spec=grid_spec,
        compiler_params=pltpu.CompilerParams(
            dimension_semantics=("parallel", "arbitrary"),
            vmem_limit_bytes=vmem_limit,
        ),
        cost_estimate=cost,
    )(h_re1, h_re2, wr1, wr2, br, whh12, whh3, bhh, gamma, beta, whr_p, bhr_p)

    return out_full[:B, :R]


def init_params(key, hidden_size, relation_size):
    H, R = hidden_size, relation_size
    ks = jax.random.split(key, 6)
    scale = 0.1
    wr = scale * jax.random.normal(ks[0], (2 * H, H), jnp.float32)     # r: Linear(2H -> H)
    br = scale * jax.random.normal(ks[1], (1, H), jnp.float32)
    whh = scale * jax.random.normal(ks[2], (3 * H, H), jnp.float32)    # hid2hid: Linear(3H -> H)
    bhh = scale * jax.random.normal(ks[3], (1, H), jnp.float32)
    gamma = jnp.ones((1, H), jnp.float32)                              # LayerNorm(H)
    beta = jnp.zeros((1, H), jnp.float32)
    whr = scale * jax.random.normal(ks[4], (H, R), jnp.float32)        # hid2rel: Linear(H -> R)
    bhr = scale * jax.random.normal(ks[5], (1, R), jnp.float32)
    return (wr, br, whh, bhh, gamma, beta, whr, bhr)


def re_reference(h_re1, h_re2, params):
    """Pure-JAX reference, mirrors the PyTorch forward exactly (bug included)."""
    wr, br, whh, bhh, gamma, beta, whr, bhr = params
    h_global = jnp.concatenate((h_re1, h_re2), axis=-1)
    h_global = jnp.tanh(h_global @ wr + br[0])
    h_global = jnp.max(h_global, axis=0)
    hre1 = jnp.max(h_re1, axis=0)
    hre2 = jnp.max(h_re1, axis=0)
    re = jnp.concatenate((hre1, hre2, h_global), axis=-1)
    re = re @ whh + bhh[0]
    mean = jnp.mean(re, axis=-1, keepdims=True)
    var = jnp.mean((re - mean) ** 2, axis=-1, keepdims=True)
    re = (re - mean) / jnp.sqrt(var + 1e-5) * gamma[0] + beta[0]
    re = jnp.where(re > 0, re, jnp.exp(re) - 1.0)
    return re @ whr + bhr[0]


if __name__ == "__main__":
    L, B, H, R = 8, 8, 32, 16   # length, batch, hidden_size, relation_size

    key = jax.random.PRNGKey(0)
    k1, k2, kp = jax.random.split(key, 3)
    h_re1 = jax.random.normal(k1, (L, B, H), jnp.float32)
    h_re2 = jax.random.normal(k2, (L, B, H), jnp.float32)
    mask = jnp.ones((L, B), jnp.float32)   # unused by forward (kept for signature parity)

    params = init_params(kp, H, R)

    # tile_l=4 -> 2 length-tiles: exercises the running-max accumulator path.
    out = re_forward(h_re1, h_re2, params, tile_l=4)
    out = jax.block_until_ready(out)

    ref = re_reference(h_re1, h_re2, params)
    assert out.shape == (B, R)
    assert jnp.allclose(out, ref, atol=1e-4, rtol=1e-4), "mismatch vs reference"

    print("KERNEL_OK")
</pallas_src>

<mosaic_0001>
module attributes {stable_mosaic.version = 11 : i64} {
  func.func @re_kernel(%arg0: i32, %arg1: i32, %arg2: memref<4x8x32xf32, #tpu.memory_space<vmem>>, %arg3: memref<4x8x32xf32, #tpu.memory_space<vmem>>, %arg4: memref<32x32xf32, #tpu.memory_space<vmem>>, %arg5: memref<32x32xf32, #tpu.memory_space<vmem>>, %arg6: memref<1x32xf32, #tpu.memory_space<vmem>>, %arg7: memref<32x32xf32, #tpu.memory_space<vmem>>, %arg8: memref<32x32xf32, #tpu.memory_space<vmem>>, %arg9: memref<1x32xf32, #tpu.memory_space<vmem>>, %arg10: memref<1x32xf32, #tpu.memory_space<vmem>>, %arg11: memref<1x32xf32, #tpu.memory_space<vmem>>, %arg12: memref<32x128xf32, #tpu.memory_space<vmem>>, %arg13: memref<1x128xf32, #tpu.memory_space<vmem>>, %arg14: memref<8x128xf32, #tpu.memory_space<vmem>>, %arg15: memref<8x32xf32, #tpu.memory_space<vmem>>, %arg16: memref<8x32xf32, #tpu.memory_space<vmem>>) attributes {dimension_semantics = [#tpu.dimension_semantics<parallel>, #tpu.dimension_semantics<arbitrary>], iteration_bounds = array<i64: 1, 2>, scalar_prefetch = 0 : i64, scratch_operands = 2 : i64, tpu.core_type = #tpu.core_type<tc>, window_params = [{transform_indices = @transform_0, window_bounds = array<i64: 4, 8, 32>}, {transform_indices = @transform_1, window_bounds = array<i64: 4, 8, 32>}, {pipeline_mode = #tpu.pipeline_mode<synchronous>, transform_indices = @transform_2, window_bounds = array<i64: 32, 32>}, {pipeline_mode = #tpu.pipeline_mode<synchronous>, transform_indices = @transform_3, window_bounds = array<i64: 32, 32>}, {pipeline_mode = #tpu.pipeline_mode<synchronous>, transform_indices = @transform_4, window_bounds = array<i64: 1, 32>}, {pipeline_mode = #tpu.pipeline_mode<synchronous>, transform_indices = @transform_5, window_bounds = array<i64: 32, 32>}, {pipeline_mode = #tpu.pipeline_mode<synchronous>, transform_indices = @transform_6, window_bounds = array<i64: 32, 32>}, {pipeline_mode = #tpu.pipeline_mode<synchronous>, transform_indices = @transform_7, window_bounds = array<i64: 1, 32>}, {pipeline_mode = #tpu.pipeline_mode<synchronous>, transform_indices = @transform_8, window_bounds = array<i64: 1, 32>}, {pipeline_mode = #tpu.pipeline_mode<synchronous>, transform_indices = @transform_9, window_bounds = array<i64: 1, 32>}, {pipeline_mode = #tpu.pipeline_mode<synchronous>, transform_indices = @transform_10, window_bounds = array<i64: 32, 128>}, {pipeline_mode = #tpu.pipeline_mode<synchronous>, transform_indices = @transform_11, window_bounds = array<i64: 1, 128>}, {transform_indices = @transform_12, window_bounds = array<i64: 8, 128>}]} {
    %c0_i32 = arith.constant 0 : i32
    %0 = arith.cmpi eq, %arg1, %c0_i32 : i32
    %1 = arith.extui %0 : i1 to i32
    %c0_i32_0 = arith.constant 0 : i32
    %2 = arith.cmpi ne, %1, %c0_i32_0 : i32
    scf.if %2 {
      %cst_22 = arith.constant 0xFF800000 : f32
      %24 = vector.broadcast %cst_22 : f32 to vector<8x32xf32>
      %c0_23 = arith.constant 0 : index
      %c0_24 = arith.constant 0 : index
      %25 = vector.load %arg15[%c0_23, %c0_24] : memref<8x32xf32, #tpu.memory_space<vmem>>, vector<8x32xf32>
      tpu.vector_store %arg15[%c0_23, %c0_24], %24 {strides = array<i32>} : memref<8x32xf32, #tpu.memory_space<vmem>>, vector<8x32xf32>,
      %cst_25 = arith.constant 0xFF800000 : f32
      %26 = vector.broadcast %cst_25 : f32 to vector<8x32xf32>
      %c0_26 = arith.constant 0 : index
      %c0_27 = arith.constant 0 : index
      %27 = vector.load %arg16[%c0_26, %c0_27] : memref<8x32xf32, #tpu.memory_space<vmem>>, vector<8x32xf32>
      tpu.vector_store %arg16[%c0_26, %c0_27], %26 {strides = array<i32>} : memref<8x32xf32, #tpu.memory_space<vmem>>, vector<8x32xf32>,
    } else {
    }
    %c0 = arith.constant 0 : index
    %c0_1 = arith.constant 0 : index
    %c0_2 = arith.constant 0 : index
    %3 = vector.load %arg2[%c0, %c0_1, %c0_2] : memref<4x8x32xf32, #tpu.memory_space<vmem>>, vector<4x8x32xf32>
    %c0_3 = arith.constant 0 : index
    %c0_4 = arith.constant 0 : index
    %c0_5 = arith.constant 0 : index
    %4 = vector.load %arg3[%c0_3, %c0_4, %c0_5] : memref<4x8x32xf32, #tpu.memory_space<vmem>>, vector<4x8x32xf32>
    %5 = vector.shape_cast %3 : vector<4x8x32xf32> to vector<32x32xf32>
    %6 = vector.shape_cast %4 : vector<4x8x32xf32> to vector<32x32xf32>
    %c0_6 = arith.constant 0 : index
    %c0_7 = arith.constant 0 : index
    %7 = vector.load %arg4[%c0_6, %c0_7] : memref<32x32xf32, #tpu.memory_space<vmem>>, vector<32x32xf32>
    %cst = arith.constant dense<0.000000e+00> : vector<32x32xf32>
    %8 = tpu.matmul %5, %7, %cst {dimension_numbers = #tpu.dot_dimension_numbers<[1], [0], [0], [1], [0, 0, 1, 1], [], []>} : vector<32x32xf32>, vector<32x32xf32>, vector<32x32xf32> -> vector<32x32xf32>
    %c0_8 = arith.constant 0 : index
    %c0_9 = arith.constant 0 : index
    %9 = vector.load %arg5[%c0_8, %c0_9] : memref<32x32xf32, #tpu.memory_space<vmem>>, vector<32x32xf32>
    %cst_10 = arith.constant dense<0.000000e+00> : vector<32x32xf32>
    %10 = tpu.matmul %6, %9, %cst_10 {dimension_numbers = #tpu.dot_dimension_numbers<[1], [0], [0], [1], [0, 0, 1, 1], [], []>} : vector<32x32xf32>, vector<32x32xf32>, vector<32x32xf32> -> vector<32x32xf32>
    %11 = arith.addf %8, %10 : vector<32x32xf32>
    %c0_11 = arith.constant 0 : index
    %c0_12 = arith.constant 0 : index
    %12 = vector.load %arg15[%c0_11, %c0_12] : memref<8x32xf32, #tpu.memory_space<vmem>>, vector<8x32xf32>
    %13 = vector.shape_cast %11 : vector<32x32xf32> to vector<4x8x32xf32>
    %cst_13 = arith.constant dense<0xFF800000> : vector<8x32xf32>
    %14 = vector.multi_reduction <maximumf>, %13, %cst_13 [0] : vector<4x8x32xf32> to vector<8x32xf32>
    %15 = arith.maximumf %12, %14 : vector<8x32xf32>
    %c0_14 = arith.constant 0 : index
    %c0_15 = arith.constant 0 : index
    %16 = vector.load %arg15[%c0_14, %c0_15] : memref<8x32xf32, #tpu.memory_space<vmem>>, vector<8x32xf32>
    tpu.vector_store %arg15[%c0_14, %c0_15], %15 {strides = array<i32>} : memref<8x32xf32, #tpu.memory_space<vmem>>, vector<8x32xf32>,
    %c0_16 = arith.constant 0 : index
    %c0_17 = arith.constant 0 : index
    %17 = vector.load %arg16[%c0_16, %c0_17] : memref<8x32xf32, #tpu.memory_space<vmem>>, vector<8x32xf32>
    %cst_18 = arith.constant dense<0xFF800000> : vector<8x32xf32>
    %18 = vector.multi_reduction <maximumf>, %3, %cst_18 [0] : vector<4x8x32xf32> to vector<8x32xf32>
    %19 = arith.maximumf %17, %18 : vector<8x32xf32>
    %c0_19 = arith.constant 0 : index
    %c0_20 = arith.constant 0 : index
    %20 = vector.load %arg16[%c0_19, %c0_20] : memref<8x32xf32, #tpu.memory_space<vmem>>, vector<8x32xf32>
    tpu.vector_store %arg16[%c0_19, %c0_20], %19 {strides = array<i32>} : memref<8x32xf32, #tpu.memory_space<vmem>>, vector<8x32xf32>,
    %c1_i32 = arith.constant 1 : i32
    %21 = arith.cmpi eq, %arg1, %c1_i32 : i32
    %22 = arith.extui %21 : i1 to i32
    %c0_i32_21 = arith.constant 0 : i32
    %23 = arith.cmpi ne, %22, %c0_i32_21 : i32
    scf.if %23 {
      %c0_22 = arith.constant 0 : index
      %c0_23 = arith.constant 0 : index
      %24 = vector.load %arg15[%c0_22, %c0_23] : memref<8x32xf32, #tpu.memory_space<vmem>>, vector<8x32xf32>
      %c0_24 = arith.constant 0 : index
      %c0_25 = arith.constant 0 : index
      %25 = vector.load %arg6[%c0_24, %c0_25] : memref<1x32xf32, #tpu.memory_space<vmem>>, vector<1x32xf32>
      %26 = vector.broadcast %25 : vector<1x32xf32> to vector<8x32xf32>
      %27 = arith.addf %24, %26 : vector<8x32xf32>
      %28 = math.tanh %27 : vector<8x32xf32>
      %c0_26 = arith.constant 0 : index
      %c0_27 = arith.constant 0 : index
      %29 = vector.load %arg16[%c0_26, %c0_27] : memref<8x32xf32, #tpu.memory_space<vmem>>, vector<8x32xf32>
      %c0_28 = arith.constant 0 : index
      %c0_29 = arith.constant 0 : index
      %30 = vector.load %arg7[%c0_28, %c0_29] : memref<32x32xf32, #tpu.memory_space<vmem>>, vector<32x32xf32>
      %cst_30 = arith.constant dense<0.000000e+00> : vector<8x32xf32>
      %31 = tpu.matmul %29, %30, %cst_30 {dimension_numbers = #tpu.dot_dimension_numbers<[1], [0], [0], [1], [0, 0, 1, 1], [], []>} : vector<8x32xf32>, vector<32x32xf32>, vector<8x32xf32> -> vector<8x32xf32>
      %c0_31 = arith.constant 0 : index
      %c0_32 = arith.constant 0 : index
      %32 = vector.load %arg8[%c0_31, %c0_32] : memref<32x32xf32, #tpu.memory_space<vmem>>, vector<32x32xf32>
      %cst_33 = arith.constant dense<0.000000e+00> : vector<8x32xf32>
      %33 = tpu.matmul %28, %32, %cst_33 {dimension_numbers = #tpu.dot_dimension_numbers<[1], [0], [0], [1], [0, 0, 1, 1], [], []>} : vector<8x32xf32>, vector<32x32xf32>, vector<8x32xf32> -> vector<8x32xf32>
      %34 = arith.addf %31, %33 : vector<8x32xf32>
      %c0_34 = arith.constant 0 : index
      %c0_35 = arith.constant 0 : index
      %35 = vector.load %arg9[%c0_34, %c0_35] : memref<1x32xf32, #tpu.memory_space<vmem>>, vector<1x32xf32>
      %36 = vector.broadcast %35 : vector<1x32xf32> to vector<8x32xf32>
      %37 = arith.addf %34, %36 : vector<8x32xf32>
      %cst_36 = arith.constant dense<0.000000e+00> : vector<8xf32>
      %38 = vector.multi_reduction <add>, %37, %cst_36 [1] : vector<8x32xf32> to vector<8xf32>
      %39 = vector.shape_cast %38 : vector<8xf32> to vector<8x1xf32>
      %cst_37 = arith.constant 3.200000e+01 : f32
      %40 = vector.broadcast %cst_37 : f32 to vector<8x1xf32>
      %41 = arith.divf %39, %40 : vector<8x1xf32>
      %42 = vector.broadcast %41 : vector<8x1xf32> to vector<8x32xf32>
      %43 = arith.subf %37, %42 : vector<8x32xf32>
      %44 = arith.mulf %43, %43 : vector<8x32xf32>
      %cst_38 = arith.constant dense<0.000000e+00> : vector<8xf32>
      %45 = vector.multi_reduction <add>, %44, %cst_38 [1] : vector<8x32xf32> to vector<8xf32>
      %46 = vector.shape_cast %45 : vector<8xf32> to vector<8x1xf32>
      %cst_39 = arith.constant 3.200000e+01 : f32
      %47 = vector.broadcast %cst_39 : f32 to vector<8x1xf32>
      %48 = arith.divf %46, %47 : vector<8x1xf32>
      %49 = vector.broadcast %41 : vector<8x1xf32> to vector<8x32xf32>
      %50 = arith.subf %37, %49 : vector<8x32xf32>
      %cst_40 = arith.constant 9.99999974E-6 : f32
      %51 = vector.broadcast %cst_40 : f32 to vector<8x1xf32>
      %52 = arith.addf %48, %51 : vector<8x1xf32>
      %53 = math.rsqrt %52 : vector<8x1xf32>
      %54 = vector.broadcast %53 : vector<8x1xf32> to vector<8x32xf32>
      %55 = arith.mulf %50, %54 : vector<8x32xf32>
      %c0_41 = arith.constant 0 : index
      %c0_42 = arith.constant 0 : index
      %56 = vector.load %arg10[%c0_41, %c0_42] : memref<1x32xf32, #tpu.memory_space<vmem>>, vector<1x32xf32>
      %57 = vector.broadcast %56 : vector<1x32xf32> to vector<8x32xf32>
      %58 = arith.mulf %55, %57 : vector<8x32xf32>
      %c0_43 = arith.constant 0 : index
      %c0_44 = arith.constant 0 : index
      %59 = vector.load %arg11[%c0_43, %c0_44] : memref<1x32xf32, #tpu.memory_space<vmem>>, vector<1x32xf32>
      %60 = vector.broadcast %59 : vector<1x32xf32> to vector<8x32xf32>
      %61 = arith.addf %58, %60 : vector<8x32xf32>
      %cst_45 = arith.constant 0.000000e+00 : f32
      %62 = vector.broadcast %cst_45 : f32 to vector<8x32xf32>
      %63 = arith.cmpf ogt, %61, %62 : vector<8x32xf32>
      %cst_46 = arith.constant 0.000000e+00 : f32
      %64 = vector.broadcast %cst_46 : f32 to vector<8x32xf32>
      %65 = arith.minimumf %61, %64 : vector<8x32xf32>
      %66 = math.exp %65 : vector<8x32xf32>
      %cst_47 = arith.constant 1.000000e+00 : f32
      %67 = vector.broadcast %cst_47 : f32 to vector<8x32xf32>
      %68 = arith.subf %66, %67 : vector<8x32xf32>
      %69 = arith.select %63, %61, %68 : vector<8x32xi1>, vector<8x32xf32>
      %c0_48 = arith.constant 0 : index
      %c0_49 = arith.constant 0 : index
      %70 = vector.load %arg12[%c0_48, %c0_49] : memref<32x128xf32, #tpu.memory_space<vmem>>, vector<32x128xf32>
      %cst_50 = arith.constant dense<0.000000e+00> : vector<8x128xf32>
      %71 = tpu.matmul %69, %70, %cst_50 {dimension_numbers = #tpu.dot_dimension_numbers<[1], [0], [0], [1], [0, 0, 1, 1], [], []>} : vector<8x32xf32>, vector<32x128xf32>, vector<8x128xf32> -> vector<8x128xf32>
      %c0_51 = arith.constant 0 : index
      %c0_52 = arith.constant 0 : index
      %72 = vector.load %arg13[%c0_51, %c0_52] : memref<1x128xf32, #tpu.memory_space<vmem>>, vector<1x128xf32>
      %73 = vector.broadcast %72 : vector<1x128xf32> to vector<8x128xf32>
      %74 = arith.addf %71, %73 : vector<8x128xf32>
      %c0_53 = arith.constant 0 : index
      %c0_54 = arith.constant 0 : index
      %75 = vector.load %arg14[%c0_53, %c0_54] : memref<8x128xf32, #tpu.memory_space<vmem>>, vector<8x128xf32>
      tpu.vector_store %arg14[%c0_53, %c0_54], %74 {strides = array<i32>} : memref<8x128xf32, #tpu.memory_space<vmem>>, vector<8x128xf32>,
    } else {
    }
    return
  }
  func.func @transform_0(%arg0: i32, %arg1: i32) -> (i32, i32, i32) {
    %c0_i32 = arith.constant 0 : i32
    %c0_i32_0 = arith.constant 0 : i32
    return %arg1, %arg0, %c0_i32 : i32, i32, i32
  }
  func.func @transform_1(%arg0: i32, %arg1: i32) -> (i32, i32, i32) {
    %c0_i32 = arith.constant 0 : i32
    %c0_i32_0 = arith.constant 0 : i32
    return %arg1, %arg0, %c0_i32 : i32, i32, i32
  }
  func.func @transform_2(%arg0: i32, %arg1: i32) -> (i32, i32) {
    %c0_i32 = arith.constant 0 : i32
    %c0_i32_0 = arith.constant 0 : i32
    %c0_i32_1 = arith.constant 0 : i32
    return %c0_i32, %c0_i32_0 : i32, i32
  }
  func.func @transform_3(%arg0: i32, %arg1: i32) -> (i32, i32) {
    %c0_i32 = arith.constant 0 : i32
    %c0_i32_0 = arith.constant 0 : i32
    %c0_i32_1 = arith.constant 0 : i32
    return %c0_i32, %c0_i32_0 : i32, i32
  }
  func.func @transform_4(%arg0: i32, %arg1: i32) -> (i32, i32) {
    %c0_i32 = arith.constant 0 : i32
    %c0_i32_0 = arith.constant 0 : i32
    %c0_i32_1 = arith.constant 0 : i32
    return %c0_i32, %c0_i32_0 : i32, i32
  }
  func.func @transform_5(%arg0: i32, %arg1: i32) -> (i32, i32) {
    %c0_i32 = arith.constant 0 : i32
    %c0_i32_0 = arith.constant 0 : i32
    %c0_i32_1 = arith.constant 0 : i32
    return %c0_i32, %c0_i32_0 : i32, i32
  }
  func.func @transform_6(%arg0: i32, %arg1: i32) -> (i32, i32) {
    %c0_i32 = arith.constant 0 : i32
    %c0_i32_0 = arith.constant 0 : i32
    %c0_i32_1 = arith.constant 0 : i32
    return %c0_i32, %c0_i32_0 : i32, i32
  }
  func.func @transform_7(%arg0: i32, %arg1: i32) -> (i32, i32) {
    %c0_i32 = arith.constant 0 : i32
    %c0_i32_0 = arith.constant 0 : i32
    %c0_i32_1 = arith.constant 0 : i32
    return %c0_i32, %c0_i32_0 : i32, i32
  }
  func.func @transform_8(%arg0: i32, %arg1: i32) -> (i32, i32) {
    %c0_i32 = arith.constant 0 : i32
    %c0_i32_0 = arith.constant 0 : i32
    %c0_i32_1 = arith.constant 0 : i32
    return %c0_i32, %c0_i32_0 : i32, i32
  }
  func.func @transform_9(%arg0: i32, %arg1: i32) -> (i32, i32) {
    %c0_i32 = arith.constant 0 : i32
    %c0_i32_0 = arith.constant 0 : i32
    %c0_i32_1 = arith.constant 0 : i32
    return %c0_i32, %c0_i32_0 : i32, i32
  }
  func.func @transform_10(%arg0: i32, %arg1: i32) -> (i32, i32) {
    %c0_i32 = arith.constant 0 : i32
    %c0_i32_0 = arith.constant 0 : i32
    %c0_i32_1 = arith.constant 0 : i32
    return %c0_i32, %c0_i32_0 : i32, i32
  }
  func.func @transform_11(%arg0: i32, %arg1: i32) -> (i32, i32) {
    %c0_i32 = arith.constant 0 : i32
    %c0_i32_0 = arith.constant 0 : i32
    %c0_i32_1 = arith.constant 0 : i32
    return %c0_i32, %c0_i32_0 : i32, i32
  }
  func.func @transform_12(%arg0: i32, %arg1: i32) -> (i32, i32) {
    %c0_i32 = arith.constant 0 : i32
    %c0_i32_0 = arith.constant 0 : i32
    return %arg0, %c0_i32 : i32, i32
  }
}

</mosaic_0001>

<llo_original>
// kernel: tpu_custom_call.1
$region0: #{tpu_custom_call.1}
  #allocation0 [shape = 'u32[]', space=smem, size = 0x4, offset = 0x4, fixed_abs, tag = 'smem constant byte address 0x4 - core index']
  #allocation1 [shape = 'u32[72,128]{1,0:T(1,128)}', space=vmem, size = 0x9000, scoped, tag = 'internal scratch']
  #allocation2 [shape = 'f32[8,32]{1,0:T(8,128)}', space=vmem, size = 0x1000, scoped, tag = 'scratch operand']
  #allocation3 [shape = 'f32[8,32]{1,0:T(8,128)}', space=vmem, size = 0x1000, scoped, tag = 'scratch operand']
  %s0 = inlined_call_operand.hbm [shape: f32[8,8,32], index: 0, kind: input, shape index: {}]
  %s1 = inlined_call_operand.hbm [shape: f32[8,8,32], index: 1, kind: input, shape index: {}]
  %s2 = inlined_call_operand.hbm [shape: f32[32,32], index: 2, kind: input, shape index: {}]
  %s3 = inlined_call_operand.hbm [shape: f32[32,32], index: 3, kind: input, shape index: {}]
  %s4 = inlined_call_operand.vmem [shape: f32[1,32], index: 4, kind: input, shape index: {}]
  %s5 = inlined_call_operand.hbm [shape: f32[32,32], index: 5, kind: input, shape index: {}]
  %s6 = inlined_call_operand.hbm [shape: f32[32,32], index: 6, kind: input, shape index: {}]
  %s7 = inlined_call_operand.vmem [shape: f32[1,32], index: 7, kind: input, shape index: {}]
  %s8 = inlined_call_operand.vmem [shape: f32[1,32], index: 8, kind: input, shape index: {}]
  %s9 = inlined_call_operand.vmem [shape: f32[1,32], index: 9, kind: input, shape index: {}]
  %s10 = inlined_call_operand.hbm [shape: f32[32,128], index: 10, kind: input, shape index: {}]
  %s11 = inlined_call_operand.vmem [shape: f32[1,128], index: 11, kind: input, shape index: {}]
  %s12 = inlined_call_operand.hbm [shape: f32[8,128], index: 12, kind: output, shape index: {}]
  %s13 = sld [smem:[#allocation0]]
  $region117: #{tpu_custom_call.1} parent=0
    _
  %s15 = ssub.s32 1, %s13
  %s16 = scalar_select 0, %s15, %s13
  $region1: #{tpu_custom_call.1} parent=0
    #allocation4 [shape = 'u8[32768]{0}', space=vmem, size = 0x8000, scoped, tag = 'input window, operand 0']
    #allocation5 [shape = 's32[2]{0}', space=sflag, size = 0x8, scoped, tag = 'scoped memory for tpu_custom_call.1']
    #allocation6 [shape = 's32[2]{0}', space=sflag, size = 0x8, scoped, tag = 'scoped memory for tpu_custom_call.1']
    #allocation7 [shape = 'u8[32768]{0}', space=vmem, size = 0x8000, scoped, tag = 'input window, operand 1']
    #allocation8 [shape = 's32[2]{0}', space=sflag, size = 0x8, scoped, tag = 'scoped memory for tpu_custom_call.1']
    #allocation9 [shape = 'u8[16384]{0}', space=vmem, size = 0x4000, scoped, tag = 'input window, operand 2, single buffered']
    #allocation10 [shape = 'u8[16384]{0}', space=vmem, size = 0x4000, scoped, tag = 'input window, operand 3, single buffered']
    #allocation11 [shape = 's32[1]{0}', space=sflag, size = 0x4, scoped, tag = 'scoped memory for tpu_custom_call.1']
    #allocation12 [shape = 'u8[16384]{0}', space=vmem, size = 0x4000, scoped, tag = 'input window, operand 5, single buffered']
    #allocation13 [shape = 'u8[16384]{0}', space=vmem, size = 0x4000, scoped, tag = 'input window, operand 6, single buffered']
    #allocation14 [shape = 's32[1]{0}', space=sflag, size = 0x4, scoped, tag = 'scoped memory for tpu_custom_call.1']
    #allocation15 [shape = 'u8[16384]{0}', space=vmem, size = 0x4000, scoped, tag = 'input window, operand 10, single buffered']
    #allocation16 [shape = 'u8[4096]{0}', space=vmem, size = 0x1000, scoped, tag = 'output window, operand 0, single buffered']
    %17 = vsyncpa [#allocation5], 0
    %s18 = scalar_lea.sflag [#allocation5], 1
    %19 = vsyncpa %s18, 0
    %20 = vsyncpa [#allocation8], 0
    %s21 = scalar_lea.sflag [#allocation8], 1
    %22 = vsyncpa %s21, 0
    %23 = vsyncpa [#allocation11], 0
    %24 = vsyncpa [#allocation14], 0
    %25 = vsyncpa [#allocation6], 0
    loop: start=0, step=1, limit=4
    $region2: #{tpu_custom_call.1} parent=1 // loop_pre_header
      _
    $region3: #{tpu_custom_call.1} parent=1 // loop_header
      %s27 = sphi 0, %s31
      %p28 = scmp.ge.s32.totalorder %s27, 4
      %s34 = sphi 0, %s46
      %s35 = sphi 0, %s42
      %s36 = sphi 0, %s34
      %s37 = sphi 0, %s35
      %s38 = sphi 0, %s36
      %s39 = sphi 0, %s37
      %s51 = sphi 0, %s53
      %s54 = sphi 0, %s51
      %s55 = sphi 0, %s54
      %s71 = sphi 0, %s55
      %s79 = sphi 0, %s81
      %s82 = sphi 0, %s79
      %s83 = sphi 0, %s82
      %s99 = sphi 0, %s83
      %s103 = sphi 0, %s103
      %s105 = sphi 0, %s103
      %s106 = sphi 0, %s105
      %s120 = sphi 0, %s106
      %s124 = sphi 0, %s124
      %s126 = sphi 0, %s124
      %s127 = sphi 0, %s126
      %s141 = sphi 0, %s127
      %s145 = sphi 0, %s145
      %s147 = sphi 0, %s145
      %s148 = sphi 0, %s147
      %s162 = sphi 0, %s148
      %s166 = sphi 0, %s166
      %s168 = sphi 0, %s166
      %s169 = sphi 0, %s168
      %s183 = sphi 0, %s169
      %s187 = sphi 0, %s187
      %s189 = sphi 0, %s187
      %s190 = sphi 0, %s189
      %s204 = sphi 0, %s190
      %s208 = sphi 0, %s208
      %s210 = sphi 0, %s208
      %s211 = sphi 0, %s210
      %s225 = sphi 0, %s211
      %s229 = sphi 0, %s229
      %s231 = sphi 0, %s229
      %s232 = sphi 0, %s231
      %s246 = sphi 0, %s232
      %s250 = sphi 0, %s250
      %s252 = sphi 0, %s250
      %s253 = sphi 0, %s252
      %s267 = sphi 0, %s253
      %s271 = sphi 0, %s271
      %s273 = sphi 0, %s271
      %s274 = sphi 0, %s273
      %s288 = sphi 0, %s274
      %s292 = sphi 0, %s292
      %s294 = sphi 0, %s292
      %s295 = sphi 0, %s294
      %s309 = sphi 0, %s295
      %s315 = sphi 0, %s317
      %s318 = sphi 0, %s315
      %s319 = sphi 0, %s318
      %s335 = sphi 0, %s319
    $region4: #{tpu_custom_call.1} parent=1 // loop_header_branch
      %30 = sbr.rel (%p28) target = $region8
    $region5: #{tpu_custom_call.1} parent=1 // loop_body
      %s32 = ssub.s32 %s27, 1
      %s33 = ssub.s32 %s27, 2
      %s40 = sadd.s32 1, %s35
      %p41 = scmp.ge.s32.totalorder %s40, 2
      %s42 = scalar_select %p41, 0, %s40
      %s43 = sadd.s32 1, %s34
      %s44 = scalar_select %p41, %s43, %s34
      %p45 = scmp.ge.s32.totalorder %s44, 1
      %s46 = scalar_select %p45, 0, %s44
      %s47 = ssub.s32 %s35, %s42
      %s48 = ssub.s32 %s34, %s46
      %s49 = sor.u32 %s47, %s48
      %p50 = scmp.eq.s32.totalorder %s49, 0
      %s52 = sadd.s32 %s51, 1
      %s53 = scalar_select %p50, %s51, %s52
      %p56 = pneg %p50
      %p57 = scmp.eq.s32.totalorder %s27, 1
      %p58 = por %p56, %p57
      %p59 = scmp.ne.s32.totalorder %s51, %s54
      %p60 = scmp.eq.s32.totalorder %s27, 0
      %p61 = por %p59, %p60
      %p62 = scmp.ne.s32.totalorder %s51, %s54
      %p63 = scmp.eq.s32.totalorder %s32, 1
      %p64 = por %p62, %p63
      %p65 = scmp.ne.s32.totalorder %s54, %s55
      %p66 = scmp.eq.s32.totalorder %s32, 0
      %p67 = por %p65, %p66
      %p68 = scmp.ne.s32.totalorder %s54, %s55
      %p69 = scmp.eq.s32.totalorder %s33, 1
      %p70 = por %p68, %p69
      %p72 = scmp.ne.s32.totalorder %s55, %s71
      %p73 = scmp.eq.s32.totalorder %s33, 0
      %p74 = por %p72, %p73
      %s75 = ssub.s32 %s35, %s42
      %s76 = ssub.s32 %s34, %s46
      %s77 = sor.u32 %s75, %s76
      %p78 = scmp.eq.s32.totalorder %s77, 0
      %s80 = sadd.s32 %s79, 1
      %s81 = scalar_select %p78, %s79, %s80
      %p84 = pneg %p78
      %p85 = scmp.eq.s32.totalorder %s27, 1
      %p86 = por %p84, %p85
      %p87 = scmp.ne.s32.totalorder %s79, %s82
      %p88 = scmp.eq.s32.totalorder %s27, 0
      %p89 = por %p87, %p88
      %p90 = scmp.ne.s32.totalorder %s79, %s82
      %p91 = scmp.eq.s32.totalorder %s32, 1
      %p92 = por %p90, %p91
      %p93 = scmp.ne.s32.totalorder %s82, %s83
      %p94 = scmp.eq.s32.totalorder %s32, 0
      %p95 = por %p93, %p94
      %p96 = scmp.ne.s32.totalorder %s82, %s83
      %p97 = scmp.eq.s32.totalorder %s33, 1
      %p98 = por %p96, %p97
      %p100 = scmp.ne.s32.totalorder %s83, %s99
      %p101 = scmp.eq.s32.totalorder %s33, 0
      %p102 = por %p100, %p101
      %s104 = sadd.s32 %s103, 1
      %p107 = scmp.eq.s32.totalorder %s27, 1
      %p108 = scmp.ne.s32.totalorder %s103, %s105
      %p109 = scmp.eq.s32.totalorder %s27, 0
      %p110 = por %p108, %p109
      %p111 = scmp.ne.s32.totalorder %s103, %s105
      %p112 = scmp.eq.s32.totalorder %s32, 1
      %p113 = por %p111, %p112
      %p114 = scmp.ne.s32.totalorder %s105, %s106
      %p115 = scmp.eq.s32.totalorder %s32, 0
      %p116 = por %p114, %p115
      %p117 = scmp.ne.s32.totalorder %s105, %s106
      %p118 = scmp.eq.s32.totalorder %s33, 1
      %p119 = por %p117, %p118
      %p121 = scmp.ne.s32.totalorder %s106, %s120
      %p122 = scmp.eq.s32.totalorder %s33, 0
      %p123 = por %p121, %p122
      %s125 = sadd.s32 %s124, 1
      %p128 = scmp.eq.s32.totalorder %s27, 1
      %p129 = scmp.ne.s32.totalorder %s124, %s126
      %p130 = scmp.eq.s32.totalorder %s27, 0
      %p131 = por %p129, %p130
      %p132 = scmp.ne.s32.totalorder %s124, %s126
      %p133 = scmp.eq.s32.totalorder %s32, 1
      %p134 = por %p132, %p133
      %p135 = scmp.ne.s32.totalorder %s126, %s127
      %p136 = scmp.eq.s32.totalorder %s32, 0
      %p137 = por %p135, %p136
      %p138 = scmp.ne.s32.totalorder %s126, %s127
      %p139 = scmp.eq.s32.totalorder %s33, 1
      %p140 = por %p138, %p139
      %p142 = scmp.ne.s32.totalorder %s127, %s141
      %p143 = scmp.eq.s32.totalorder %s33, 0
      %p144 = por %p142, %p143
      %s146 = sadd.s32 %s145, 1
      %p149 = scmp.eq.s32.totalorder %s27, 1
      %p150 = scmp.ne.s32.totalorder %s145, %s147
      %p151 = scmp.eq.s32.totalorder %s27, 0
      %p152 = por %p150, %p151
      %p153 = scmp.ne.s32.totalorder %s145, %s147
      %p154 = scmp.eq.s32.totalorder %s32, 1
      %p155 = por %p153, %p154
      %p156 = scmp.ne.s32.totalorder %s147, %s148
      %p157 = scmp.eq.s32.totalorder %s32, 0
      %p158 = por %p156, %p157
      %p159 = scmp.ne.s32.totalorder %s147, %s148
      %p160 = scmp.eq.s32.totalorder %s33, 1
      %p161 = por %p159, %p160
      %p163 = scmp.ne.s32.totalorder %s148, %s162
      %p164 = scmp.eq.s32.totalorder %s33, 0
      %p165 = por %p163, %p164
      %s167 = sadd.s32 %s166, 1
      %p170 = scmp.eq.s32.totalorder %s27, 1
      %p171 = scmp.ne.s32.totalorder %s166, %s168
      %p172 = scmp.eq.s32.totalorder %s27, 0
      %p173 = por %p171, %p172
      %p174 = scmp.ne.s32.totalorder %s166, %s168
      %p175 = scmp.eq.s32.totalorder %s32, 1
      %p176 = por %p174, %p175
      %p177 = scmp.ne.s32.totalorder %s168, %s169
      %p178 = scmp.eq.s32.totalorder %s32, 0
      %p179 = por %p177, %p178
      %p180 = scmp.ne.s32.totalorder %s168, %s169
      %p181 = scmp.eq.s32.totalorder %s33, 1
      %p182 = por %p180, %p181
      %p184 = scmp.ne.s32.totalorder %s169, %s183
      %p185 = scmp.eq.s32.totalorder %s33, 0
      %p186 = por %p184, %p185
      %s188 = sadd.s32 %s187, 1
      %p191 = scmp.eq.s32.totalorder %s27, 1
      %p192 = scmp.ne.s32.totalorder %s187, %s189
      %p193 = scmp.eq.s32.totalorder %s27, 0
      %p194 = por %p192, %p193
      %p195 = scmp.ne.s32.totalorder %s187, %s189
      %p196 = scmp.eq.s32.totalorder %s32, 1
      %p197 = por %p195, %p196
      %p198 = scmp.ne.s32.totalorder %s189, %s190
      %p199 = scmp.eq.s32.totalorder %s32, 0
      %p200 = por %p198, %p199
      %p201 = scmp.ne.s32.totalorder %s189, %s190
      %p202 = scmp.eq.s32.totalorder %s33, 1
      %p203 = por %p201, %p202
      %p205 = scmp.ne.s32.totalorder %s190, %s204
      %p206 = scmp.eq.s32.totalorder %s33, 0
      %p207 = por %p205, %p206
      %s209 = sadd.s32 %s208, 1
      %p212 = scmp.eq.s32.totalorder %s27, 1
      %p213 = scmp.ne.s32.totalorder %s208, %s210
      %p214 = scmp.eq.s32.totalorder %s27, 0
      %p215 = por %p213, %p214
      %p216 = scmp.ne.s32.totalorder %s208, %s210
      %p217 = scmp.eq.s32.totalorder %s32, 1
      %p218 = por %p216, %p217
      %p219 = scmp.ne.s32.totalorder %s210, %s211
      %p220 = scmp.eq.s32.totalorder %s32, 0
      %p221 = por %p219, %p220
      %p222 = scmp.ne.s32.totalorder %s210, %s211
      %p223 = scmp.eq.s32.totalorder %s33, 1
      %p224 = por %p222, %p223
      %p226 = scmp.ne.s32.totalorder %s211, %s225
      %p227 = scmp.eq.s32.totalorder %s33, 0
      %p228 = por %p226, %p227
      %s230 = sadd.s32 %s229, 1
      %p233 = scmp.eq.s32.totalorder %s27, 1
      %p234 = scmp.ne.s32.totalorder %s229, %s231
      %p235 = scmp.eq.s32.totalorder %s27, 0
      %p236 = por %p234, %p235
      %p237 = scmp.ne.s32.totalorder %s229, %s231
      %p238 = scmp.eq.s32.totalorder %s32, 1
      %p239 = por %p237, %p238
      %p240 = scmp.ne.s32.totalorder %s231, %s232
      %p241 = scmp.eq.s32.totalorder %s32, 0
      %p242 = por %p240, %p241
      %p243 = scmp.ne.s32.totalorder %s231, %s232
      %p244 = scmp.eq.s32.totalorder %s33, 1
      %p245 = por %p243, %p244
      %p247 = scmp.ne.s32.totalorder %s232, %s246
      %p248 = scmp.eq.s32.totalorder %s33, 0
      %p249 = por %p247, %p248
      %s251 = sadd.s32 %s250, 1
      %p254 = scmp.eq.s32.totalorder %s27, 1
      %p255 = scmp.ne.s32.totalorder %s250, %s252
      %p256 = scmp.eq.s32.totalorder %s27, 0
      %p257 = por %p255, %p256
      %p258 = scmp.ne.s32.totalorder %s250, %s252
      %p259 = scmp.eq.s32.totalorder %s32, 1
      %p260 = por %p258, %p259
      %p261 = scmp.ne.s32.totalorder %s252, %s253
      %p262 = scmp.eq.s32.totalorder %s32, 0
      %p263 = por %p261, %p262
      %p264 = scmp.ne.s32.totalorder %s252, %s253
      %p265 = scmp.eq.s32.totalorder %s33, 1
      %p266 = por %p264, %p265
      %p268 = scmp.ne.s32.totalorder %s253, %s267
      %p269 = scmp.eq.s32.totalorder %s33, 0
      %p270 = por %p268, %p269
      %s272 = sadd.s32 %s271, 1
      %p275 = scmp.eq.s32.totalorder %s27, 1
      %p276 = scmp.ne.s32.totalorder %s271, %s273
      %p277 = scmp.eq.s32.totalorder %s27, 0
      %p278 = por %p276, %p277
      %p279 = scmp.ne.s32.totalorder %s271, %s273
      %p280 = scmp.eq.s32.totalorder %s32, 1
      %p281 = por %p279, %p280
      %p282 = scmp.ne.s32.totalorder %s273, %s274
      %p283 = scmp.eq.s32.totalorder %s32, 0
      %p284 = por %p282, %p283
      %p285 = scmp.ne.s32.totalorder %s273, %s274
      %p286 = scmp.eq.s32.totalorder %s33, 1
      %p287 = por %p285, %p286
      %p289 = scmp.ne.s32.totalorder %s274, %s288
      %p290 = scmp.eq.s32.totalorder %s33, 0
      %p291 = por %p289, %p290
      %s293 = sadd.s32 %s292, 1
      %p296 = scmp.eq.s32.totalorder %s27, 1
      %p297 = scmp.ne.s32.totalorder %s292, %s294
      %p298 = scmp.eq.s32.totalorder %s27, 0
      %p299 = por %p297, %p298
      %p300 = scmp.ne.s32.totalorder %s292, %s294
      %p301 = scmp.eq.s32.totalorder %s32, 1
      %p302 = por %p300, %p301
      %p303 = scmp.ne.s32.totalorder %s294, %s295
      %p304 = scmp.eq.s32.totalorder %s32, 0
      %p305 = por %p303, %p304
      %p306 = scmp.ne.s32.totalorder %s294, %s295
      %p307 = scmp.eq.s32.totalorder %s33, 1
      %p308 = por %p306, %p307
      %p310 = scmp.ne.s32.totalorder %s295, %s309
      %p311 = scmp.eq.s32.totalorder %s33, 0
      %p312 = por %p310, %p311
      %s313 = ssub.s32 %s34, %s46
      %p314 = scmp.eq.s32.totalorder %s313, 0
      %s316 = sadd.s32 %s315, 1
      %s317 = scalar_select %p314, %s315, %s316
      %p320 = pneg %p314
      %p321 = scmp.eq.s32.totalorder %s27, 1
      %p322 = por %p320, %p321
      %p323 = scmp.ne.s32.totalorder %s315, %s318
      %p324 = scmp.eq.s32.totalorder %s27, 0
      %p325 = por %p323, %p324
      %p326 = scmp.ne.s32.totalorder %s315, %s318
      %p327 = scmp.eq.s32.totalorder %s32, 1
      %p328 = por %p326, %p327
      %p329 = scmp.ne.s32.totalorder %s318, %s319
      %p330 = scmp.eq.s32.totalorder %s32, 0
      %p331 = por %p329, %p330
      %p332 = scmp.ne.s32.totalorder %s318, %s319
      %p333 = scmp.eq.s32.totalorder %s33, 1
      %p334 = por %p332, %p333
      %p336 = scmp.ne.s32.totalorder %s319, %s335
      %p337 = scmp.eq.s32.totalorder %s33, 0
      %p338 = por %p336, %p337
      %p339 = scmp.le.s32.totalorder 1, %s27
      %p340 = scmp.lt.s32.totalorder %s27, 3
      %p341 = pnand %p339, %p340
      %p342 = pneg %p341
      // Predicated region
      $region9: #{tpu_custom_call.1} parent=5 // pred_check
        _
      $region10: #{tpu_custom_call.1} parent=5 // pred_check_branch
        %344 = sbr.rel (%p341) target = $region12
      $region11: #{tpu_custom_call.1} parent=5 // pred_region
        %s345 = ssub.s32 %s27, 1
        // Predicated region
        $region13: #{tpu_custom_call.1} parent=11 // pred_check
          %p346 = pneg %p116
        $region14: #{tpu_custom_call.1} parent=11 // pred_check_branch
          %348 = sbr.rel (%p346) target = $region16
        $region15: #{tpu_custom_call.1} parent=11 // pred_region
          %350 = vsyncadd [#allocation8], 0
          %s351 = sshll.u32 %s2, 4
          %s352 = int_to_ptr.hbm [resolvable:$true] %s351
          %s353 = sshll.u32 [#allocation9], 4
          %s354 = int_to_ptr.vmem [resolvable:$true] %s353
          %359 = dma.hbm_to_vmem [thread:$0]  %s352, 512, %s354, [#allocation8], 128, 128, 8
        $region16: #{tpu_custom_call.1} parent=11 // pred_fallthru
          _
        // Predicated region
        $region17: #{tpu_custom_call.1} parent=11 // pred_check
          %p360 = pneg %p137
        $region18: #{tpu_custom_call.1} parent=11 // pred_check_branch
          %362 = sbr.rel (%p360) target = $region20
        $region19: #{tpu_custom_call.1} parent=11 // pred_region
          %364 = vsyncadd [#allocation11], 0
          %s365 = sshll.u32 %s3, 4
          %s366 = int_to_ptr.hbm [resolvable:$true] %s365
          %s367 = sshll.u32 [#allocation10], 4
          %s368 = int_to_ptr.vmem [resolvable:$true] %s367
          %373 = dma.hbm_to_vmem [thread:$0]  %s366, 512, %s368, [#allocation11], 128, 128, 8
        $region20: #{tpu_custom_call.1} parent=11 // pred_fallthru
          _
        // Predicated region
        $region21: #{tpu_custom_call.1} parent=11 // pred_check
          %p374 = pneg %p158
        $region22: #{tpu_custom_call.1} parent=11 // pred_check_branch
          %376 = sbr.rel (%p374) target = $region24
        $region23: #{tpu_custom_call.1} parent=11 // pred_region
          _
        $region24: #{tpu_custom_call.1} parent=11 // pred_fallthru
          _
        // Predicated region
        $region25: #{tpu_custom_call.1} parent=11 // pred_check
          %p377 = pneg %p179
        $region26: #{tpu_custom_call.1} parent=11 // pred_check_branch
          %379 = sbr.rel (%p377) target = $region28
        $region27: #{tpu_custom_call.1} parent=11 // pred_region
          %381 = vsyncadd [#allocation11], 0
          %s382 = sshll.u32 %s5, 4
          %s383 = int_to_ptr.hbm [resolvable:$true] %s382
          %s384 = sshll.u32 [#allocation12], 4
          %s385 = int_to_ptr.vmem [resolvable:$true] %s384
          %390 = dma.hbm_to_vmem [thread:$0]  %s383, 512, %s385, [#allocation11], 128, 128, 8
        $region28: #{tpu_custom_call.1} parent=11 // pred_fallthru
          _
        // Predicated region
        $region29: #{tpu_custom_call.1} parent=11 // pred_check
          %p391 = pneg %p200
        $region30: #{tpu_custom_call.1} parent=11 // pred_check_branch
          %393 = sbr.rel (%p391) target = $region32
        $region31: #{tpu_custom_call.1} parent=11 // pred_region
          %395 = vsyncadd [#allocation14], 0
          %s396 = sshll.u32 %s6, 4
          %s397 = int_to_ptr.hbm [resolvable:$true] %s396
          %s398 = sshll.u32 [#allocation13], 4
          %s399 = int_to_ptr.vmem [resolvable:$true] %s398
          %404 = dma.hbm_to_vmem [thread:$0]  %s397, 512, %s399, [#allocation14], 128, 128, 8
        $region32: #{tpu_custom_call.1} parent=11 // pred_fallthru
          _
        // Predicated region
        $region33: #{tpu_custom_call.1} parent=11 // pred_check
          %p405 = pneg %p221
        $region34: #{tpu_custom_call.1} parent=11 // pred_check_branch
          %407 = sbr.rel (%p405) target = $region36
        $region35: #{tpu_custom_call.1} parent=11 // pred_region
          _
        $region36: #{tpu_custom_call.1} parent=11 // pred_fallthru
          _
        // Predicated region
        $region37: #{tpu_custom_call.1} parent=11 // pred_check
          %p408 = pneg %p242
        $region38: #{tpu_custom_call.1} parent=11 // pred_check_branch
          %410 = sbr.rel (%p408) target = $region40
        $region39: #{tpu_custom_call.1} parent=11 // pred_region
          _
        $region40: #{tpu_custom_call.1} parent=11 // pred_fallthru
          _
        // Predicated region
        $region41: #{tpu_custom_call.1} parent=11 // pred_check
          %p411 = pneg %p263
        $region42: #{tpu_custom_call.1} parent=11 // pred_check_branch
          %413 = sbr.rel (%p411) target = $region44
        $region43: #{tpu_custom_call.1} parent=11 // pred_region
          _
        $region44: #{tpu_custom_call.1} parent=11 // pred_fallthru
          _
        // Predicated region
        $region45: #{tpu_custom_call.1} parent=11 // pred_check
          %p414 = pneg %p284
        $region46: #{tpu_custom_call.1} parent=11 // pred_check_branch
          %416 = sbr.rel (%p414) target = $region48
        $region47: #{tpu_custom_call.1} parent=11 // pred_region
          %418 = vsyncadd [#allocation14], 0
          %s419 = sshll.u32 %s10, 4
          %s420 = int_to_ptr.hbm [resolvable:$true] %s419
          %s421 = sshll.u32 [#allocation15], 4
          %s422 = int_to_ptr.vmem [resolvable:$true] %s421
          %427 = dma.hbm_to_vmem [thread:$0]  %s420, 512, %s422, [#allocation14], 128, 128, 8
        $region48: #{tpu_custom_call.1} parent=11 // pred_fallthru
          _
        // Predicated region
        $region49: #{tpu_custom_call.1} parent=11 // pred_check
          %p428 = pneg %p305
        $region50: #{tpu_custom_call.1} parent=11 // pred_check_branch
          %430 = sbr.rel (%p428) target = $region52
        $region51: #{tpu_custom_call.1} parent=11 // pred_region
          _
        $region52: #{tpu_custom_call.1} parent=11 // pred_fallthru
          _
      $region12: #{tpu_custom_call.1} parent=5 // pred_fallthru
        _
      %p431 = scmp.lt.s32.totalorder %s27, 2
      // Predicated region
      $region53: #{tpu_custom_call.1} parent=5 // pred_check
        %p432 = pneg %p431
      $region54: #{tpu_custom_call.1} parent=5 // pred_check_branch
        %434 = sbr.rel (%p432) target = $region56
      $region55: #{tpu_custom_call.1} parent=5 // pred_region
        // Predicated region
        $region57: #{tpu_custom_call.1} parent=55 // pred_check
          %p435 = pneg %p61
        $region58: #{tpu_custom_call.1} parent=55 // pred_check_branch
          %437 = sbr.rel (%p435) target = $region60
        $region59: #{tpu_custom_call.1} parent=55 // pred_region
          %s438 = sand.u32 %s51, 1
          %s439 = scalar_lea.sflag [#allocation5], %s438
          %s440 = sand.u32 %s51, 1
          %s441 = smul.addr %s440, 32
          %s442 = scalar_lea.vmem [#allocation4], %s441
          %s443 = smul.u32 4, %s35
          %445 = vsyncadd %s439, 0
          %s446 = sadd.s32 %s34, %s443
          %s447 = smul.addr %s446, 8
          %s448 = scalar_lea.hbm %s0, %s447
          %s449 = sshll.u32 %s448, 4
          %s450 = int_to_ptr.hbm [resolvable:$true] %s449
          %s451 = sshll.u32 %s442, 4
          %s452 = int_to_ptr.vmem [resolvable:$true] %s451
          %457 = dma.hbm_to_vmem [thread:$0]  %s450, 512, %s452, %s439, 128, 128, 8
        $region60: #{tpu_custom_call.1} parent=55 // pred_fallthru
          _
        // Predicated region
        $region61: #{tpu_custom_call.1} parent=55 // pred_check
          %p458 = pneg %p89
        $region62: #{tpu_custom_call.1} parent=55 // pred_check_branch
          %460 = sbr.rel (%p458) target = $region64
        $region63: #{tpu_custom_call.1} parent=55 // pred_region
          %s461 = sand.u32 %s27, 1
          %s462 = scalar_lea.sflag [#allocation8], %s461
          %s463 = sand.u32 %s79, 1
          %s464 = smul.addr %s463, 32
          %s465 = scalar_lea.vmem [#allocation7], %s464
          %s466 = smul.u32 4, %s35
          %468 = vsyncadd %s462, 0
          %s469 = sadd.s32 %s34, %s466
          %s470 = smul.addr %s469, 8
          %s471 = scalar_lea.hbm %s1, %s470
          %s472 = sshll.u32 %s471, 4
          %s473 = int_to_ptr.hbm [resolvable:$true] %s472
          %s474 = sshll.u32 %s465, 4
          %s475 = int_to_ptr.vmem [resolvable:$true] %s474
          %480 = dma.hbm_to_vmem [thread:$0]  %s473, 512, %s475, %s462, 128, 128, 8
        $region64: #{tpu_custom_call.1} parent=55 // pred_fallthru
          _
      $region56: #{tpu_custom_call.1} parent=5 // pred_fallthru
        _
      %p481 = scmp.le.s32.totalorder 1, %s27
      %p482 = scmp.lt.s32.totalorder %s27, 3
      %p483 = pnand %p481, %p482
      %p484 = pneg %p483
      // Predicated region
      $region65: #{tpu_custom_call.1} parent=5 // pred_check
        _
      $region66: #{tpu_custom_call.1} parent=5 // pred_check_branch
        %486 = sbr.rel (%p483) target = $region68
      $region67: #{tpu_custom_call.1} parent=5 // pred_region
        %s487 = ssub.s32 %s27, 1
        %s488 = sand.u32 %s54, 1
        %s489 = scalar_lea.sflag [#allocation5], %s488
        %s490 = sand.u32 %s54, 1
        %s491 = smul.addr %s490, 32
        %s492 = scalar_lea.vmem [#allocation4], %s491
        // Predicated region
        $region69: #{tpu_custom_call.1} parent=67 // pred_check
          %p493 = pneg %p67
        $region70: #{tpu_custom_call.1} parent=67 // pred_check_branch
          %495 = sbr.rel (%p493) target = $region72
        $region71: #{tpu_custom_call.1} parent=67 // pred_region
          %497 = dma.done %s489, 512
        $region72: #{tpu_custom_call.1} parent=67 // pred_fallthru
          _
        %s498 = sand.u32 %s32, 1
        %s499 = scalar_lea.sflag [#allocation8], %s498
        %s500 = sand.u32 %s82, 1
        %s501 = smul.addr %s500, 32
        %s502 = scalar_lea.vmem [#allocation7], %s501
        // Predicated region
        $region73: #{tpu_custom_call.1} parent=67 // pred_check
          %p503 = pneg %p95
        $region74: #{tpu_custom_call.1} parent=67 // pred_check_branch
          %505 = sbr.rel (%p503) target = $region76
        $region75: #{tpu_custom_call.1} parent=67 // pred_region
          %507 = dma.done %s499, 512
        $region76: #{tpu_custom_call.1} parent=67 // pred_fallthru
          _
        // Predicated region
        $region77: #{tpu_custom_call.1} parent=67 // pred_check
          %p508 = pneg %p116
        $region78: #{tpu_custom_call.1} parent=67 // pred_check_branch
          %510 = sbr.rel (%p508) target = $region80
        $region79: #{tpu_custom_call.1} parent=67 // pred_region
          %512 = dma.done [#allocation8], 512
        $region80: #{tpu_custom_call.1} parent=67 // pred_fallthru
          _
        // Predicated region
        $region81: #{tpu_custom_call.1} parent=67 // pred_check
          %p513 = pneg %p137
        $region82: #{tpu_custom_call.1} parent=67 // pred_check_branch
          %515 = sbr.rel (%p513) target = $region84
        $region83: #{tpu_custom_call.1} parent=67 // pred_region
          %517 = dma.done [#allocation11], 512
        $region84: #{tpu_custom_call.1} parent=67 // pred_fallthru
          _
        // Predicated region
        $region85: #{tpu_custom_call.1} parent=67 // pred_check
          %p518 = pneg %p179
        $region86: #{tpu_custom_call.1} parent=67 // pred_check_branch
          %520 = sbr.rel (%p518) target = $region88
        $region87: #{tpu_custom_call.1} parent=67 // pred_region
          %522 = dma.done [#allocation11], 512
        $region88: #{tpu_custom_call.1} parent=67 // pred_fallthru
          _
        // Predicated region
        $region89: #{tpu_custom_call.1} parent=67 // pred_check
          %p523 = pneg %p200
        $region90: #{tpu_custom_call.1} parent=67 // pred_check_branch
          %525 = sbr.rel (%p523) target = $region92
        $region91: #{tpu_custom_call.1} parent=67 // pred_region
          %527 = dma.done [#allocation14], 512
        $region92: #{tpu_custom_call.1} parent=67 // pred_fallthru
          _
        // Predicated region
        $region93: #{tpu_custom_call.1} parent=67 // pred_check
          %p528 = pneg %p284
        $region94: #{tpu_custom_call.1} parent=67 // pred_check_branch
          %530 = sbr.rel (%p528) target = $region96
        $region95: #{tpu_custom_call.1} parent=67 // pred_region
          %532 = dma.done [#allocation14], 512
        $region96: #{tpu_custom_call.1} parent=67 // pred_fallthru
          _
        %s533 = sand.u32 %s54, 1
        %s534 = scalar_lea.sflag [#allocation5], %s533
        %s535 = sand.u32 %s54, 1
        %s536 = smul.addr %s535, 32
        %s537 = scalar_lea.vmem [#allocation4], %s536
        %p538 = pneg %p67
        %p539 = pneg %p64
        %s540 = sand.u32 %s32, 1
        %s541 = scalar_lea.sflag [#allocation8], %s540
        %s542 = sand.u32 %s82, 1
        %s543 = smul.addr %s542, 32
        %s544 = scalar_lea.vmem [#allocation7], %s543
        %p545 = pneg %p95
        %p546 = pneg %p92
        %p547 = pneg %p116
        %p548 = pneg %p113
        %p549 = pneg %p137
        %p550 = pneg %p134
        %p551 = pneg %p158
        %p552 = pneg %p155
        %p553 = pneg %p179
        %p554 = pneg %p176
        %p555 = pneg %p200
        %p556 = pneg %p197
        %p557 = pneg %p221
        %p558 = pneg %p218
        %p559 = pneg %p242
        %p560 = pneg %p239
        %p561 = pneg %p263
        %p562 = pneg %p260
        %p563 = pneg %p284
        %p564 = pneg %p281
        %p565 = pneg %p305
        %p566 = pneg %p302
        %p567 = pneg %p331
        %p568 = pneg %p328
        %s569 = smul.u32 4, %s37
        %s570 = smul.u32 4, %s37
        %p571 = scmp.eq.s32.totalorder %s37, 0
        // Predicated region
        $region97: #{tpu_custom_call.1} parent=67 // pred_check
          %p572 = pneg %p571
        $region98: #{tpu_custom_call.1} parent=67 // pred_check_branch
          %574 = sbr.rel (%p572) target = $region100
        $region99: #{tpu_custom_call.1} parent=67 // pred_region
          %vm575 = vcmask 261120
          %576 = vst.msk [vmem:[#allocation2] sm:$0xff] %vm575, -inf
          %577 = vst.msk [vmem:[#allocation3] sm:$0xff] %vm575, -inf
        $region100: #{tpu_custom_call.1} parent=67 // pred_fallthru
          _
        %v578 = vld [vmem:[%s492] sm:$0xff]
        %v579 = vld [vmem:[%s492 + $0x8] sm:$0xff]
        %v580 = vld [vmem:[%s492 + $0x10] sm:$0xff]
        %v581 = vld [vmem:[%s492 + $0x18] sm:$0xff]
        %v582 = vld [vmem:[%s502] sm:$0xff]
        %v583 = vld [vmem:[%s502 + $0x8] sm:$0xff]
        %v584 = vld [vmem:[%s502 + $0x10] sm:$0xff]
        %v585 = vld [vmem:[%s502 + $0x18] sm:$0xff]
        %v586 = vld [vmem:[#allocation9] sm:$0xff]
        %v587 = vld [vmem:[#allocation9 + $0x8] sm:$0xff]
        %v588 = vld [vmem:[#allocation9 + $0x10] sm:$0xff]
        %v589 = vld [vmem:[#allocation9 + $0x18] sm:$0xff]
        %v590 = vld [vmem:[#allocation10] sm:$0xff]
        %v591 = vld [vmem:[#allocation10 + $0x8] sm:$0xff]
        %v592 = vld [vmem:[#allocation10 + $0x10] sm:$0xff]
        %v593 = vld [vmem:[#allocation10 + $0x18] sm:$0xff]
        %vm594 = vcmask 261120
        %v596 = vsel %vm594, %v582, 0
        %v599 = vsel %vm594, %v583, 0
        %v602 = vsel %vm594, %v584, 0
        %v605 = vsel %vm594, %v585, 0
        %607 = vmatpush.msra.mxu0 0.0
        %608 = vmatpush.msra.mxu0 0.0
        %609 = vmatpush.msra.mxu0 0.0
        %610 = vmatpush.msra.mxu0 0.0
        %611 = vmatpush.msra.mxu0 0.0
        %612 = vmatpush.msra.mxu0 0.0
        %613 = vmatpush.msra.mxu0 0.0
        %614 = vmatpush.msra.mxu0 0.0
        %615 = vmatpush.msra.mxu0 0.0
        %616 = vmatpush.msra.mxu0 0.0
        %617 = vmatpush.msra.mxu0 0.0
        %618 = vmatpush.msra.mxu0 0.0
        %619 = vmatpush.msra.mxu0 %v593
        %620 = vmatpush.msra.mxu0 %v592
        %621 = vmatpush.msra.mxu0 %v591
        %622 = vmatpush.msra.mxu0 %v590
        %623 = vmatmul.f32.gmra.mxu0 %v596
        %v624 = vpop.f32.mrf.mxu0
        %v625 = vadd.f32 0.0, %v624
        %626 = vmatmul.f32.gmra.mxu0 %v599
        %v627 = vpop.f32.mrf.mxu0
        %v628 = vadd.f32 0.0, %v627
        %629 = vmatmul.f32.gmra.mxu0 %v602
        %v630 = vpop.f32.mrf.mxu0
        %v631 = vadd.f32 0.0, %v630
        %632 = vmatmul.f32.gmra.mxu0 %v605
        %v633 = vpop.f32.mrf.mxu0
        %v634 = vadd.f32 0.0, %v633
        %635 = vdwg.mxu0
        %v637 = vsel %vm594, %v578, 0
        %v640 = vsel %vm594, %v579, 0
        %v643 = vsel %vm594, %v580, 0
        %v646 = vsel %vm594, %v581, 0
        %648 = vmatpush.msra.mxu0 0.0
        %649 = vmatpush.msra.mxu0 0.0
        %650 = vmatpush.msra.mxu0 0.0
        %651 = vmatpush.msra.mxu0 0.0
        %652 = vmatpush.msra.mxu0 0.0
        %653 = vmatpush.msra.mxu0 0.0
        %654 = vmatpush.msra.mxu0 0.0
        %655 = vmatpush.msra.mxu0 0.0
        %656 = vmatpush.msra.mxu0 0.0
        %657 = vmatpush.msra.mxu0 0.0
        %658 = vmatpush.msra.mxu0 0.0
        %659 = vmatpush.msra.mxu0 0.0
        %660 = vmatpush.msra.mxu0 %v589
        %661 = vmatpush.msra.mxu0 %v588
        %662 = vmatpush.msra.mxu0 %v587
        %663 = vmatpush.msra.mxu0 %v586
        %664 = vmatmul.f32.gmra.mxu0 %v637
        %v665 = vpop.f32.mrf.mxu0
        %v666 = vadd.f32 %v625, %v665
        %667 = vmatmul.f32.gmra.mxu0 %v640
        %v668 = vpop.f32.mrf.mxu0
        %v669 = vadd.f32 %v628, %v668
        %670 = vmatmul.f32.gmra.mxu0 %v643
        %v671 = vpop.f32.mrf.mxu0
        %v672 = vadd.f32 %v631, %v671
        %673 = vmatmul.f32.gmra.mxu0 %v646
        %v674 = vpop.f32.mrf.mxu0
        %v675 = vadd.f32 %v634, %v674
        %676 = vdwg.mxu0
        %v677 = vld [vmem:[#allocation2] sm:$0xff]
        %v678 = vsel %vm594, %v666, -inf
        %v679 = vsel %vm594, %v669, -inf
        %v680 = vsel %vm594, %v672, -inf
        %v681 = vsel %vm594, %v675, -inf
        %v682 = vmax.f32 %v678, %v679
        %v683 = vmax.f32 %v680, %v681
        %v684 = vmax.f32 %v682, %v683
        %v685 = vmax.f32 %v677, %v684
        %686 = vst.msk [vmem:[#allocation2] sm:$0xff] %vm594, %v685
        %v687 = vld [vmem:[#allocation3] sm:$0xff]
        %v688 = vsel %vm594, %v578, -inf
        %v689 = vsel %vm594, %v579, -inf
        %v690 = vsel %vm594, %v580, -inf
        %v691 = vsel %vm594, %v581, -inf
        %v692 = vmax.f32 %v688, %v689
        %v693 = vmax.f32 %v690, %v691
        %v694 = vmax.f32 %v692, %v693
        %v695 = vmax.f32 %v687, %v694
        %696 = vst.msk [vmem:[#allocation3] sm:$0xff] %vm594, %v695
        %p697 = scmp.eq.s32.totalorder %s37, 1
        // Predicated region
        $region101: #{tpu_custom_call.1} parent=67 // pred_check
          %p698 = pneg %p697
        $region102: #{tpu_custom_call.1} parent=67 // pred_check_branch
          %700 = sbr.rel (%p698) target = $region104
        $region103: #{tpu_custom_call.1} parent=67 // pred_region
          %v701 = vld [vmem:[#allocation2] sm:$0xff]
          %v702 = vld [vmem:[%s4] sm:$0x1]
          %v704 = vperm.slane %v702, 0
          %v706 = vadd.f32 %v701, %v704
          %v707 = vtanh.pop %v706
          %v708 = vld [vmem:[#allocation3] sm:$0xff]
          %v709 = vld [vmem:[#allocation12] sm:$0xff]
          %v710 = vld [vmem:[#allocation12 + $0x8] sm:$0xff]
          %v711 = vld [vmem:[#allocation12 + $0x10] sm:$0xff]
          %v712 = vld [vmem:[#allocation12 + $0x18] sm:$0xff]
          %v713 = vld [vmem:[#allocation13] sm:$0xff]
          %v714 = vld [vmem:[#allocation13 + $0x8] sm:$0xff]
          %v715 = vld [vmem:[#allocation13 + $0x10] sm:$0xff]
          %v716 = vld [vmem:[#allocation13 + $0x18] sm:$0xff]
          %v718 = vsel %vm594, %v707, 0
          %720 = vmatpush.msra.mxu0 0.0
          %721 = vmatpush.msra.mxu0 0.0
          %722 = vmatpush.msra.mxu0 0.0
          %723 = vmatpush.msra.mxu0 0.0
          %724 = vmatpush.msra.mxu0 0.0
          %725 = vmatpush.msra.mxu0 0.0
          %726 = vmatpush.msra.mxu0 0.0
          %727 = vmatpush.msra.mxu0 0.0
          %728 = vmatpush.msra.mxu0 0.0
          %729 = vmatpush.msra.mxu0 0.0
          %730 = vmatpush.msra.mxu0 0.0
          %731 = vmatpush.msra.mxu0 0.0
          %732 = vmatpush.msra.mxu0 %v716
          %733 = vmatpush.msra.mxu0 %v715
          %734 = vmatpush.msra.mxu0 %v714
          %735 = vmatpush.msra.mxu0 %v713
          %736 = vmatmul.f32.gmra.mxu0 %v718
          %v737 = vpop.f32.mrf.mxu0
          %v738 = vadd.f32 0.0, %v737
          %739 = vdwg.mxu0
          %v741 = vsel %vm594, %v708, 0
          %743 = vmatpush.msra.mxu0 0.0
          %744 = vmatpush.msra.mxu0 0.0
          %745 = vmatpush.msra.mxu0 0.0
          %746 = vmatpush.msra.mxu0 0.0
          %747 = vmatpush.msra.mxu0 0.0
          %748 = vmatpush.msra.mxu0 0.0
          %749 = vmatpush.msra.mxu0 0.0
          %750 = vmatpush.msra.mxu0 0.0
          %751 = vmatpush.msra.mxu0 0.0
          %752 = vmatpush.msra.mxu0 0.0
          %753 = vmatpush.msra.mxu0 0.0
          %754 = vmatpush.msra.mxu0 0.0
          %755 = vmatpush.msra.mxu0 %v712
          %756 = vmatpush.msra.mxu0 %v711
          %757 = vmatpush.msra.mxu0 %v710
          %758 = vmatpush.msra.mxu0 %v709
          %759 = vmatmul.f32.gmra.mxu0 %v741
          %v760 = vpop.f32.mrf.mxu0
          %v761 = vadd.f32 %v738, %v760
          %762 = vdwg.mxu0
          %v763 = vld [vmem:[%s7] sm:$0x1]
          %v765 = vperm.slane %v763, 0
          %v767 = vadd.f32 %v761, %v765
          %v768 = vsel %vm594, %v767, 0.0
          %769 = vadd.xlane.f32.xlu0 %v768
          %v770 = vpop.xlane.xlu0 %769
          %v771 = vrcp.pop 32.0
          %v772 = vmul.f32 32.0, %v771
          %v773 = vsub.f32 1.0, %v772
          %v774 = vmul.f32 %v771, %v773
          %v775 = vadd.f32 %v771, %v774
          %vm776 = vweird.f32 %v771
          %v777 = vsel %vm776, %v771, %v775
          %v778 = vmul.f32 %v770, %v777
          %v779 = vsub.f32 %v767, %v778
          %v780 = vmul.f32 %v779, %v779
          %v781 = vsel %vm594, %v780, 0.0
          %782 = vadd.xlane.f32.xlu0 %v781
          %v783 = vpop.xlane.xlu0 %782
          %v784 = vmul.f32 %v783, %v777
          %v785 = vadd.f32 %v784, 1e-05
          %v786 = vrsqrt.pop %v785
          %v787 = vmul.f32 %v786, %v785
          %v788 = vmul.f32 %v787, %v786
          %v789 = vmul.f32 0.5, %v788
          %v790 = vsub.f32 1.5, %v789
          %v791 = vmul.f32 %v786, %v790
          %vm792 = vweird.f32 %v785
          %vm793 = vweird.f32 %v786
          %vm794 = vmor %vm792, %vm793
          %v795 = vsel %vm794, %v786, %v791
          %v796 = vmul.f32 %v779, %v795
          %v797 = vld [vmem:[%s8] sm:$0x1]
          %v799 = vperm.slane %v797, 0
          %v801 = vmul.f32 %v796, %v799
          %v802 = vld [vmem:[%s9] sm:$0x1]
          %v804 = vperm.slane %v802, 0
          %v806 = vadd.f32 %v801, %v804
          %vm807 = vcmp.gt.f32.partialorder %v806, 0.0
          %v808 = vmin.f32 %v806, 0.0
          %v809 = vmul.f32 %v808, 1.442695
          %v810 = vpow.pop %v809
          %v811 = vsub.f32 %v810, 1.0
          %v812 = vsel %vm807, %v806, %v811
          %v813 = vld [vmem:[#allocation15] sm:$0xff]
          %v814 = vld [vmem:[#allocation15 + $0x8] sm:$0xff]
          %v815 = vld [vmem:[#allocation15 + $0x10] sm:$0xff]
          %v816 = vld [vmem:[#allocation15 + $0x18] sm:$0xff]
          %v817 = vld [vmem:[%s11] sm:$0x1]
          %v819 = vperm.slane %v817, 0
          %v822 = vsel %vm594, %v812, 0
          %824 = vmatpush.msra.mxu0 0.0
          %825 = vmatpush.msra.mxu0 0.0
          %826 = vmatpush.msra.mxu0 0.0
          %827 = vmatpush.msra.mxu0 0.0
          %828 = vmatpush.msra.mxu0 0.0
          %829 = vmatpush.msra.mxu0 0.0
          %830 = vmatpush.msra.mxu0 0.0
          %831 = vmatpush.msra.mxu0 0.0
          %832 = vmatpush.msra.mxu0 0.0
          %833 = vmatpush.msra.mxu0 0.0
          %834 = vmatpush.msra.mxu0 0.0
          %835 = vmatpush.msra.mxu0 0.0
          %836 = vmatpush.msra.mxu0 %v816
          %837 = vmatpush.msra.mxu0 %v815
          %838 = vmatpush.msra.mxu0 %v814
          %839 = vmatpush.msra.mxu0 %v813
          %840 = vmatmul.f32.gmra.mxu0 %v822
          %v841 = vpop.f32.mrf.mxu0
          %v842 = vadd.f32 %v819, %v841
          %843 = vdwg.mxu0
          %844 = vst [vmem:[#allocation16] sm:$0xff] %v842
        $region104: #{tpu_custom_call.1} parent=67 // pred_fallthru
          _
        // Predicated region
        $region105: #{tpu_custom_call.1} parent=67 // pred_check
          %p845 = pneg %p328
        $region106: #{tpu_custom_call.1} parent=67 // pred_check_branch
          %847 = sbr.rel (%p845) target = $region108
        $region107: #{tpu_custom_call.1} parent=67 // pred_region
          %849 = vsyncadd [#allocation6], 0
          %s850 = smul.addr %s36, 8
          %s851 = scalar_lea.hbm %s12, %s850
          %s853 = sshll.u32 [#allocation16], 4
          %s854 = int_to_ptr.vmem [resolvable:$true] %s853
          %s855 = sshll.u32 %s851, 4
          %s856 = int_to_ptr.hbm [resolvable:$true] %s855
          %858 = dma.vmem_to_hbm [thread:$0]  %s854, 128, %s856, [#allocation6]
        $region108: #{tpu_custom_call.1} parent=67 // pred_fallthru
          _
        // Predicated region
        $region109: #{tpu_custom_call.1} parent=67 // pred_check
          %p859 = pneg %p328
        $region110: #{tpu_custom_call.1} parent=67 // pred_check_branch
          %861 = sbr.rel (%p859) target = $region112
        $region111: #{tpu_custom_call.1} parent=67 // pred_region
          %863 = dma.done [#allocation6], 128
        $region112: #{tpu_custom_call.1} parent=67 // pred_fallthru
          _
      $region68: #{tpu_custom_call.1} parent=5 // pred_fallthru
        _
      %p864 = scmp.le.s32.totalorder 2, %s27
      // Predicated region
      $region113: #{tpu_custom_call.1} parent=5 // pred_check
        %p865 = pneg %p864
      $region114: #{tpu_custom_call.1} parent=5 // pred_check_branch
        %867 = sbr.rel (%p865) target = $region116
      $region115: #{tpu_custom_call.1} parent=5 // pred_region
        %s868 = ssub.s32 %s27, 2
      $region116: #{tpu_custom_call.1} parent=5 // pred_fallthru
        _
    $region6: #{tpu_custom_call.1} parent=1 // loop_footer
      %s31 = sadd.s32 1, %s27
    $region7: #{tpu_custom_call.1} parent=1 // loop_footer_branch
      %26 = sbr.rel target = $region3
    $region8: #{tpu_custom_call.1} parent=1 // loop_exit
      _
    %869 = vsyncpa [#allocation5], 1
    %s870 = scalar_lea.sflag [#allocation5], 1
    %871 = vsyncpa %s870, 1
    %872 = vsyncpa [#allocation8], 1
    %s873 = scalar_lea.sflag [#allocation8], 1
    %874 = vsyncpa %s873, 1
    %875 = vsyncpa [#allocation11], 1
    %876 = vsyncpa [#allocation14], 1
    %877 = vsyncpa [#allocation6], 1
    %s878 = scalar_lea.sflag [#allocation6], 1
    %879 = vsyncpa %s878, 1

</llo_original>
